<compile_context>
chip_gen: v7x
topology: tpu7x:2x2x1
jax: 0.10.0
libtpu: 0.0.40
codegen_flags: <defaults>
</compile_context>

<pallas_src>
import functools

import jax
import jax.numpy as jnp
from jax import lax
from jax.experimental import pallas as pl
from jax.experimental.pallas import tpu as pltpu


_DEFAULT_BLOCK_BYTES = 8 * 1024 * 1024     # ~8 MiB per input block
_VMEM_LIMIT_BYTES = 48 * 1024 * 1024       # 2 inputs x 2 buffers x 8 MiB + slack


def _round_up(x, m):
    return (x + m - 1) // m * m


def _mse_kernel(y_ref, p_ref, out_ref, acc_ref, *,
                num_k, row_blocks, tile_rows, slab, lanes, valid_rows,
                need_mask, has_dummy):
    """Accumulate sum((y - pred)^2) for one (tile_rows, lanes) block.

    Grid = (num_partials, num_k): outer axis is a 'parallel' split (one partial
    per TensorCore on megacore parts); inner axis walks row blocks and is the
    carried reduction ('arbitrary') axis.  The accumulator is a small
    (slab, lanes) f32 tile carried through an inner fori_loop; the cross-lane
    reduce + scalar SMEM store run once per partial on the last inner step.
    """
    c = pl.program_id(0)      # partial-sum index ('parallel' axis)
    k = pl.program_id(1)      # row-block index  ('arbitrary' reduction axis)
    blk = c * num_k + k       # logical global block index
    folds = tile_rows // slab

    @pl.when(k == 0)
    def _():
        acc_ref[...] = jnp.zeros_like(acc_ref)

    def accumulate(masked):
        def body(i, acc):
            r0 = pl.multiple_of(i * slab, slab)
            yv = y_ref[pl.ds(r0, slab), :].astype(jnp.float32)
            pv = p_ref[pl.ds(r0, slab), :].astype(jnp.float32)
            d = yv - pv
            sq = d * d
            if masked:
                # Only the overhanging last block pays for iota/compare/select.
                row = (blk * tile_rows + r0
                       + lax.broadcasted_iota(jnp.int32, (slab, lanes), 0))
                sq = jnp.where(row < valid_rows, sq, 0.0)
            return acc + sq

        acc = lax.fori_loop(0, folds, body,
                            jnp.zeros((slab, lanes), jnp.float32))
        acc_ref[...] += acc

    if need_mask:
        # Fast path for all full blocks; masked path only for the last real
        # block.  A dummy trailing block (blk >= row_blocks) matches neither
        # branch and is skipped entirely.
        @pl.when(blk < row_blocks - 1)
        def _():
            accumulate(False)

        @pl.when(blk == row_blocks - 1)
        def _():
            accumulate(True)
    elif has_dummy:
        @pl.when(blk < row_blocks)
        def _():
            accumulate(False)
    else:
        accumulate(False)

    @pl.when(k == num_k - 1)
    def _():
        out_ref[0, 0] = jnp.sum(acc_ref[...])


@functools.partial(jax.jit, static_argnames=("block_bytes",))
def ml_mse_loss(y, pred, block_bytes=_DEFAULT_BLOCK_BYTES):
    """Pallas implementation of mlMSEloss.forward(y, pred)."""
    assert y.shape == pred.shape and y.ndim == 3
    B, S, D = y.shape
    num = B * S * D
    itemsize = jnp.dtype(y.dtype).itemsize
    min_sub = {4: 8, 2: 16, 1: 32}.get(itemsize, 8)   # min sublane tile per dtype

    # --- lane-dense 2-D layout ------------------------------------------------
    if D % 128 == 0 and (B * S) >= min_sub:
        # Layout-free: only leading dims are merged; the (sublane, lane) tiling
        # of the trailing dims is untouched, so XLA emits no relayout copy.
        lanes = D
        rows = B * S
        y2 = y.reshape(rows, D)
        p2 = pred.reshape(rows, D)
    else:
        # Ragged last dim (or tiny input): a copy is unavoidable; ravel and
        # zero-pad to whole (min_sub, 128) tiles.  Zeros contribute 0.
        lanes = 128
        chunk = min_sub * lanes
        padded = _round_up(num, chunk)
        yf = jnp.ravel(y)
        pf = jnp.ravel(pred)
        if padded != num:
            yf = jnp.pad(yf, (0, padded - num))
            pf = jnp.pad(pf, (0, padded - num))
        rows = padded // lanes
        y2 = yf.reshape(rows, lanes)
        p2 = pf.reshape(rows, lanes)

    # --- row tiling: big blocks, sized in bytes -------------------------------
    target_rows = max(min_sub,
                      (block_bytes // (lanes * itemsize)) // min_sub * min_sub)
    tile_rows = min(target_rows, rows // min_sub * min_sub)
    row_blocks = -(-rows // tile_rows)
    need_mask = (rows % tile_rows) != 0       # last block overhangs the array

    # Two independent partial sums whenever possible so both TensorCores of a
    # v7x chip can stream HBM concurrently; harmless (serial) on v5e/v6e.
    # TODO(synk): verify ("parallel", ...) actually shards the outer axis across
    # v7x's two TensorCores; if not, drive it via CORE_PARALLEL / core_map.
    num_partials = 2 if row_blocks >= 2 else 1
    num_k = -(-row_blocks // num_partials)
    has_dummy = num_partials * num_k > row_blocks

    # Inner accumulation slab: small enough to stay in vregs across the loop.
    max_slab = max(min_sub, (8192 // lanes) // min_sub * min_sub)
    slab = min_sub
    for cand in (64, 32, 16, 8):
        if cand <= max_slab and cand % min_sub == 0 and tile_rows % cand == 0:
            slab = cand
            break

    if has_dummy:
        def in_map(c, k):
            # Clamp the dummy trailing block of the short partial in-bounds;
            # the kernel skips its contribution.
            return (jnp.minimum(c * num_k + k, row_blocks - 1), 0)
    else:
        def in_map(c, k):
            return (c * num_k + k, 0)

    kernel = functools.partial(
        _mse_kernel, num_k=num_k, row_blocks=row_blocks, tile_rows=tile_rows,
        slab=slab, lanes=lanes, valid_rows=rows,
        need_mask=need_mask, has_dummy=has_dummy)

    cost = pl.CostEstimate(
        flops=3 * num, transcendentals=0,
        bytes_accessed=2 * rows * lanes * itemsize + num_partials * 4)

    partials = pl.pallas_call(
        kernel,
        out_shape=jax.ShapeDtypeStruct((num_partials, 1), jnp.float32),
        grid_spec=pltpu.PrefetchScalarGridSpec(
            num_scalar_prefetch=0,
            grid=(num_partials, num_k),
            in_specs=[
                pl.BlockSpec((tile_rows, lanes), in_map),
                pl.BlockSpec((tile_rows, lanes), in_map),
            ],
            out_specs=pl.BlockSpec((1, 1), lambda c, k: (c, 0),
                                   memory_space=pltpu.SMEM),
            scratch_shapes=[pltpu.VMEM((slab, lanes), jnp.float32)],
        ),
        compiler_params=pltpu.CompilerParams(
            dimension_semantics=("parallel", "arbitrary"),
            vmem_limit_bytes=_VMEM_LIMIT_BYTES,
        ),
        cost_estimate=cost,
    )(y2, p2)

    return jnp.sum(partials) / jnp.float32(num)


def _check(shape, key, dtype=jnp.float32, block_bytes=None, rtol=1e-4):
    ky, kp = jax.random.split(key)
    y = jax.random.normal(ky, shape, dtype=jnp.float32).astype(dtype)
    pred = jax.random.normal(kp, shape, dtype=jnp.float32).astype(dtype)
    if block_bytes is None:
        loss = ml_mse_loss(y, pred)
    else:
        loss = ml_mse_loss(y, pred, block_bytes=block_bytes)
    loss = jax.block_until_ready(loss)
    num = shape[0] * shape[1] * shape[2]
    ref = jnp.sum((y.astype(jnp.float32) - pred.astype(jnp.float32)) ** 2) / num
    assert jnp.allclose(loss, ref, rtol=rtol, atol=1e-5), (shape, dtype, loss, ref)


if __name__ == "__main__":
    keys = jax.random.split(jax.random.PRNGKey(0), 8)

    # Primary small shape consistent with [real_batch_size, sequence, dim].
    _check((2, 8, 32), keys[0])                                # ragged-D fallback, tiny
    _check((1, 3, 37), keys[1])                                # ragged-D with zero pad
    _check((2, 2048, 129), keys[2])                            # ragged-D, large single block
    _check((4, 1024, 512), keys[3])                            # lanes=D fast path, single block
    _check((4, 64, 512), keys[4], block_bytes=64 * 1024)       # multi-block, two partials
    _check((1, 112, 128), keys[5], block_bytes=8 * 1024)       # odd block count -> dummy block
    _check((1, 100, 128), keys[6], block_bytes=8 * 1024)       # masked overhang + dummy block
    _check((2, 64, 256), keys[7], dtype=jnp.bfloat16, rtol=1e-3)  # bf16, lanes=D path

    print("KERNEL_OK")
</pallas_src>

<mosaic_0001>
module attributes {stable_mosaic.version = 11 : i64} {
  func.func @_mse_kernel(%arg0: i32, %arg1: i32, %arg2: memref<8x128xf32, #tpu.memory_space<vmem>>, %arg3: memref<8x128xf32, #tpu.memory_space<vmem>>, %arg4: memref<1x1xf32, #tpu.memory_space<smem>>, %arg5: memref<8x128xf32, #tpu.memory_space<vmem>>) attributes {dimension_semantics = [#tpu.dimension_semantics<parallel>, #tpu.dimension_semantics<arbitrary>], iteration_bounds = array<i64: 1, 1>, scalar_prefetch = 0 : i64, scratch_operands = 1 : i64, tpu.core_type = #tpu.core_type<tc>, window_params = [{transform_indices = @transform_0, window_bounds = array<i64: 8, 128>}, {transform_indices = @transform_1, window_bounds = array<i64: 8, 128>}, {transform_indices = @transform_2, window_bounds = array<i64: 1, 1>}]} {
    %c0_i32 = arith.constant 0 : i32
    %0 = arith.cmpi eq, %arg1, %c0_i32 : i32
    %1 = arith.extui %0 : i1 to i32
    %c0_i32_0 = arith.constant 0 : i32
    %2 = arith.cmpi ne, %1, %c0_i32_0 : i32
    scf.if %2 {
      %cst_9 = arith.constant 0.000000e+00 : f32
      %19 = vector.broadcast %cst_9 : f32 to vector<8x128xf32>
      %c0_10 = arith.constant 0 : index
      %c0_11 = arith.constant 0 : index
      %20 = vector.load %arg5[%c0_10, %c0_11] : memref<8x128xf32, #tpu.memory_space<vmem>>, vector<8x128xf32>
      tpu.vector_store %arg5[%c0_10, %c0_11], %19 {strides = array<i32>} : memref<8x128xf32, #tpu.memory_space<vmem>>, vector<8x128xf32>,
    } else {
    }
    %cst = arith.constant 0.000000e+00 : f32
    %3 = vector.broadcast %cst : f32 to vector<8x128xf32>
    %c0_i32_1 = arith.constant 0 : i32
    %c8_i32 = arith.constant 8 : i32
    %4 = arith.muli %c0_i32_1, %c8_i32 : i32
    %5 = tpu.assume_multiple %4, 8 : i32
    %6 = arith.index_cast %5 : i32 to index
    %c0 = arith.constant 0 : index
    %7 = vector.load %arg2[%6, %c0] : memref<8x128xf32, #tpu.memory_space<vmem>>, vector<8x128xf32>
    %8 = arith.index_cast %5 : i32 to index
    %c0_2 = arith.constant 0 : index
    %9 = vector.load %arg3[%8, %c0_2] : memref<8x128xf32, #tpu.memory_space<vmem>>, vector<8x128xf32>
    %10 = arith.subf %7, %9 : vector<8x128xf32>
    %11 = arith.mulf %10, %10 : vector<8x128xf32>
    %12 = arith.addf %3, %11 : vector<8x128xf32>
    %c1_i32 = arith.constant 1 : i32
    %c0_3 = arith.constant 0 : index
    %c0_4 = arith.constant 0 : index
    %13 = vector.load %arg5[%c0_3, %c0_4] : memref<8x128xf32, #tpu.memory_space<vmem>>, vector<8x128xf32>
    %14 = arith.addf %13, %12 : vector<8x128xf32>
    %c0_5 = arith.constant 0 : index
    %c0_6 = arith.constant 0 : index
    %15 = vector.load %arg5[%c0_5, %c0_6] : memref<8x128xf32, #tpu.memory_space<vmem>>, vector<8x128xf32>
    tpu.vector_store %arg5[%c0_5, %c0_6], %14 {strides = array<i32>} : memref<8x128xf32, #tpu.memory_space<vmem>>, vector<8x128xf32>,
    %c0_i32_7 = arith.constant 0 : i32
    %16 = arith.cmpi eq, %arg1, %c0_i32_7 : i32
    %17 = arith.extui %16 : i1 to i32
    %c0_i32_8 = arith.constant 0 : i32
    %18 = arith.cmpi ne, %17, %c0_i32_8 : i32
    scf.if %18 {
      %c0_9 = arith.constant 0 : index
      %c0_10 = arith.constant 0 : index
      %19 = vector.load %arg5[%c0_9, %c0_10] : memref<8x128xf32, #tpu.memory_space<vmem>>, vector<8x128xf32>
      %20 = vector.shape_cast %19 : vector<8x128xf32> to vector<1x8x128xf32>
      %cst_11 = arith.constant dense<0.000000e+00> : vector<1xf32>
      %21 = vector.multi_reduction <add>, %20, %cst_11 [1, 2] : vector<1x8x128xf32> to vector<1xf32>
      %22 = vector.shape_cast %21 : vector<1xf32> to vector<1x1x1xf32>
      %23 = vector.extract %22[0, 0, 0] : f32 from vector<1x1x1xf32>
      %c0_12 = arith.constant 0 : index
      %c0_13 = arith.constant 0 : index
      %24 = memref.load %arg4[%c0_12, %c0_13] : memref<1x1xf32, #tpu.memory_space<smem>>
      memref.store %23, %arg4[%c0_12, %c0_13] : memref<1x1xf32, #tpu.memory_space<smem>>
    } else {
    }
    return
  }
  func.func @transform_0(%arg0: i32, %arg1: i32) -> (i32, i32) {
    %c1_i32 = arith.constant 1 : i32
    %0 = arith.muli %arg0, %c1_i32 : i32
    %1 = arith.addi %0, %arg1 : i32
    %c0_i32 = arith.constant 0 : i32
    %c0_i32_0 = arith.constant 0 : i32
    return %1, %c0_i32 : i32, i32
  }
  func.func @transform_1(%arg0: i32, %arg1: i32) -> (i32, i32) {
    %c1_i32 = arith.constant 1 : i32
    %0 = arith.muli %arg0, %c1_i32 : i32
    %1 = arith.addi %0, %arg1 : i32
    %c0_i32 = arith.constant 0 : i32
    %c0_i32_0 = arith.constant 0 : i32
    return %1, %c0_i32 : i32, i32
  }
  func.func @transform_2(%arg0: i32, %arg1: i32) -> (i32, i32) {
    %c0_i32 = arith.constant 0 : i32
    %c0_i32_0 = arith.constant 0 : i32
    return %arg0, %c0_i32 : i32, i32
  }
}

</mosaic_0001>

<llo_original>
// kernel: ml_mse_loss.1
$region0: #{ml_mse_loss.1}
  #allocation0 [shape = 'u32[]', space=smem, size = 0x4, offset = 0x4, fixed_abs, tag = 'smem constant byte address 0x4 - core index']
  #allocation1 [shape = 'u32[144,128]{1,0:T(1,128)}', space=vmem, size = 0x12000, scoped, tag = 'internal scratch']
  #allocation2 [shape = 'f32[8,128]{1,0:T(8,128)}', space=vmem, size = 0x1000, scoped, tag = 'scratch operand']
  %s0 = inlined_call_operand.vmem [shape: f32[8,128], index: 0, kind: input, shape index: {}]
  %s1 = inlined_call_operand.vmem [shape: f32[8,128], index: 1, kind: input, shape index: {}]
  %s2 = inlined_call_operand.hbm [shape: f32[1,1], index: 2, kind: output, shape index: {}]
  %s3 = sld [smem:[#allocation0]]
  $region26: #{ml_mse_loss.1} parent=0
    _
  %s5 = ssub.s32 1, %s3
  %s6 = scalar_select 0, %s5, %s3
  $region1: #{ml_mse_loss.1} parent=0
    #allocation3 [shape = 'u8[512]{0}', space=smem, size = 0x200, scoped, tag = 'output window, operand 0, single buffered']
    #allocation4 [shape = 's32[1]{0}', space=sflag, size = 0x4, scoped, tag = 'scoped memory for ml_mse_loss.1']
    %7 = vsyncpa [#allocation4], 0
    // Predicated region
    $region2: #{ml_mse_loss.1} parent=1 // pred_check
      _
    $region3: #{ml_mse_loss.1} parent=1 // pred_check_branch
      %9 = sbr.rel (0) target = $region5
    $region4: #{ml_mse_loss.1} parent=1 // pred_region
      %s10 = sadd.s32 0, 0
      %p11 = scmp.lt.s32.totalorder %s10, 0
      %s12 = scalar_select %p11, %s10, 0
      %s13 = smul.addr %s12, 8
      %s14 = scalar_lea.vmem %s0, %s13
      %s15 = sadd.s32 0, 0
    $region5: #{ml_mse_loss.1} parent=1 // pred_fallthru
      _
    // Predicated region
    $region6: #{ml_mse_loss.1} parent=1 // pred_check
      _
    $region7: #{ml_mse_loss.1} parent=1 // pred_check_branch
      %17 = sbr.rel (0) target = $region9
    $region8: #{ml_mse_loss.1} parent=1 // pred_region
      %s18 = sadd.s32 0, 0
      %p19 = scmp.lt.s32.totalorder %s18, 0
      %s20 = scalar_select %p19, %s18, 0
      %s21 = smul.addr %s20, 8
      %s22 = scalar_lea.vmem %s1, %s21
      %s23 = sadd.s32 0, 0
    $region9: #{ml_mse_loss.1} parent=1 // pred_fallthru
      _
    %s24 = sadd.s32 0, 0
    %p25 = scmp.lt.s32.totalorder %s24, 0
    %s26 = scalar_select %p25, %s24, 0
    %s27 = smul.addr %s26, 8
    %s28 = scalar_lea.vmem %s0, %s27
    %s29 = sadd.s32 0, 0
    %p30 = scmp.lt.s32.totalorder %s29, 0
    %s31 = scalar_select %p30, %s29, 0
    %s32 = smul.addr %s31, 8
    %s33 = scalar_lea.vmem %s1, %s32
    %s34 = sadd.s32 0, 0
    %p35 = scmp.lt.s32.totalorder %s34, 0
    %s36 = scalar_select %p35, %s34, 0
    %s37 = smul.addr %s36, 8
    %s38 = scalar_lea.vmem %s0, %s37
    %s39 = sadd.s32 0, 0
    %s40 = sadd.s32 0, 0
    %p41 = scmp.lt.s32.totalorder %s40, 0
    %s42 = scalar_select %p41, %s40, 0
    %s43 = smul.addr %s42, 8
    %s44 = scalar_lea.vmem %s1, %s43
    %s45 = sadd.s32 0, 0
    %p46 = scmp.eq.s32.totalorder 0, 0
    // Predicated region
    $region10: #{ml_mse_loss.1} parent=1 // pred_check
      %p47 = pneg %p46
    $region11: #{ml_mse_loss.1} parent=1 // pred_check_branch
      %49 = sbr.rel (%p47) target = $region13
    $region12: #{ml_mse_loss.1} parent=1 // pred_region
      %50 = vst [vmem:[#allocation2] sm:$0xff] 0.0
    $region13: #{ml_mse_loss.1} parent=1 // pred_fallthru
      _
    %v51 = vld [vmem:[%s38] sm:$0xff]
    %v52 = vld [vmem:[%s44] sm:$0xff]
    %v53 = vsub.f32 %v51, %v52
    %v54 = vmul.f32 %v53, %v53
    %v55 = vadd.f32 %v54, 0.0
    %v56 = vld [vmem:[#allocation2] sm:$0xff]
    %v57 = vadd.f32 %v56, %v55
    %58 = vst [vmem:[#allocation2] sm:$0xff] %v57
    // Predicated region
    $region14: #{ml_mse_loss.1} parent=1 // pred_check
      %p59 = pneg %p46
    $region15: #{ml_mse_loss.1} parent=1 // pred_check_branch
      %61 = sbr.rel (%p59) target = $region17
    $region16: #{ml_mse_loss.1} parent=1 // pred_region
      %v62 = vld [vmem:[#allocation2] sm:$0xff]
      %63 = vadd.xlane.f32.xlu0 %v62
      %v64 = vpop.xlane.xlu0 %63
      %v65 = vrot.slane %v64, 4
      %v66 = vadd.f32 %v64, %v65
      %v67 = vrot.slane %v66, 2
      %v68 = vadd.f32 %v66, %v67
      %v69 = vrot.slane %v68, 1
      %v70 = vadd.f32 %v68, %v69
      %s71 = vtos %v70
      %s72 = scalar_lea.smem [#allocation3], 0
      %73 = sst [smem:[%s72]] %s71
    $region17: #{ml_mse_loss.1} parent=1 // pred_fallthru
      _
    // Predicated region
    $region18: #{ml_mse_loss.1} parent=1 // pred_check
      _
    $region19: #{ml_mse_loss.1} parent=1 // pred_check_branch
      %75 = sbr.rel (0) target = $region21
    $region20: #{ml_mse_loss.1} parent=1 // pred_region
      %s77 = ssub.s32 16, 16
      %78 = vsyncadd [#allocation4], %s77
      %81 = dma.smem_to_hbm [#allocation3], 16, %s2, [#allocation4]
    $region21: #{ml_mse_loss.1} parent=1 // pred_fallthru
      _
    // Predicated region
    $region22: #{ml_mse_loss.1} parent=1 // pred_check
      _
    $region23: #{ml_mse_loss.1} parent=1 // pred_check_branch
      %83 = sbr.rel (0) target = $region25
    $region24: #{ml_mse_loss.1} parent=1 // pred_region
      %84 = dma.done [#allocation4], 16
    $region25: #{ml_mse_loss.1} parent=1 // pred_fallthru
      _
    %85 = sfence
    %86 = vsyncpa [#allocation4], 1

</llo_original>
